<compile_context>
chip_gen: v7x
topology: tpu7x:2x2x1
jax: 0.10.0
libtpu: 0.0.40
codegen_flags: <defaults>
</compile_context>

<pallas_src>
import functools

import jax
import jax.numpy as jnp
from jax.experimental import pallas as pl
from jax.experimental.pallas import tpu as pltpu

_EPS = 1e-5


def _vmem_limit_bytes():
    """Generation-aware scoped-VMEM limit (v5e/v6e: 128 MiB phys, v7x: 64)."""
    try:
        cap = int(pltpu.get_tpu_info().vmem_capacity_bytes)
    except Exception:  # conservative fallback (v7x per-core physical VMEM)
        cap = 64 * 1024 * 1024
    return max(32 * 1024 * 1024, min(96 * 1024 * 1024, (cap * 3) // 4))


# --------------------------------------------------------------------------
# Fused single-pass kernel (activation resident in VMEM): stats + normalize
# --------------------------------------------------------------------------
def _fused_kernel(x_ref, gamma_ref, beta_ref, o_ref, *, inv_count):
    x = x_ref[...].astype(jnp.float32)                  # (N, C, HWp)
    s = jnp.sum(x, axis=0)                              # (C, HWp)  VPU adds
    q = jnp.sum(x * x, axis=0)                          # (C, HWp)
    mean = jnp.sum(s, axis=-1, keepdims=True) * inv_count        # (C, 1)
    ex2 = jnp.sum(q, axis=-1, keepdims=True) * inv_count
    var = jnp.maximum(ex2 - mean * mean, 0.0)
    inv = jax.lax.rsqrt(var + _EPS)
    scale = gamma_ref[...] * inv                        # (C, 1)
    shift = beta_ref[...] - mean * scale
    o_ref[...] = (x * scale[None] + shift[None]).astype(o_ref.dtype)


# --------------------------------------------------------------------------
# Pass 1: per-channel statistics -> folded affine constants (scale, shift)
# --------------------------------------------------------------------------
def _stats_kernel(x_ref, gamma_ref, beta_ref, scale_ref, shift_ref,
                  sum_ref, sq_ref, *, inv_count):
    # x_ref: (TC, THW) tile; gamma/beta/scale/shift: (TC, 1);
    # sum/sq scratch: (TC, 128) lane-wide accumulators.
    n_id = pl.program_id(1)
    m_id = pl.program_id(2)

    @pl.when((n_id == 0) & (m_id == 0))
    def _():
        sum_ref[...] = jnp.zeros_like(sum_ref)
        sq_ref[...] = jnp.zeros_like(sq_ref)

    thw = x_ref.shape[-1]
    # Accumulate 128-lane slabs on the VPU (no per-step cross-lane reduce).
    s_acc = sum_ref[...]
    q_acc = sq_ref[...]
    for j in range(thw // 128):
        blk = x_ref[:, pl.ds(j * 128, 128)].astype(jnp.float32)
        s_acc = s_acc + blk
        q_acc = q_acc + blk * blk
    sum_ref[...] = s_acc
    sq_ref[...] = q_acc

    @pl.when((n_id == pl.num_programs(1) - 1)
             & (m_id == pl.num_programs(2) - 1))
    def _():
        # Single cross-lane (XLU) reduce per channel tile, done once.
        mean = jnp.sum(sum_ref[...], axis=-1, keepdims=True) * inv_count
        ex2 = jnp.sum(sq_ref[...], axis=-1, keepdims=True) * inv_count
        var = jnp.maximum(ex2 - mean * mean, 0.0)
        inv = jax.lax.rsqrt(var + _EPS)
        scale = gamma_ref[...] * inv
        shift = beta_ref[...] - mean * scale
        scale_ref[...] = scale
        shift_ref[...] = shift


# --------------------------------------------------------------------------
# Pass 2: streaming normalize  y = x * scale + shift
# --------------------------------------------------------------------------
def _norm_kernel(x_ref, scale_ref, shift_ref, o_ref):
    x = x_ref[...].astype(jnp.float32)
    o_ref[...] = (x * scale_ref[...] + shift_ref[...]).astype(o_ref.dtype)


# --------------------------------------------------------------------------
# Tile selection: lane-dense spatial tile, sublane-aligned channel tile.
# hwp is pre-padded to a multiple of 128; target block size ~4-8 MiB.
# --------------------------------------------------------------------------
def _pick_tiles(c, hwp, itemsize, max_block_bytes):
    tc0 = 8 if c % 8 == 0 else c
    # Lane (spatial) tile: largest multiple of 128 dividing hwp such that a
    # minimal-channel block stays under the cap.
    thw = 128
    while (hwp % (thw * 2) == 0
           and tc0 * (thw * 2) * itemsize <= max_block_bytes):
        thw *= 2
    # Channel (sublane) tile.
    if c % 8 == 0:
        tc = 8
        # Keep >= 2 channel tiles when possible so v7x's two TensorCores both
        # get work in the "parallel" channel axis of the stats pass.
        tc_cap = c // 2 if c >= 16 else c
        while (tc * 2 <= tc_cap and c % (tc * 2) == 0
               and tc * 2 * thw * itemsize <= max_block_bytes
               and tc * 2 * 128 * 4 * 2 <= max_block_bytes):  # (tc,128) f32 x2 scratch
            tc *= 2
    else:
        tc = c
    # Safety: odd channel counts force tc == c; shrink thw if the block blew up.
    while tc * thw * itemsize > max_block_bytes and thw % 256 == 0:
        thw //= 2
    return tc, thw


# --------------------------------------------------------------------------
# Wrapper: static BN selection + (fused | two-pass) pallas_calls
# --------------------------------------------------------------------------
def switchable_batchnorm2d(x_nchw, gammas, betas, pruning_rate_list,
                           pruning_rate=None, force_two_pass=False):
    """Forward of SwitchableBatchNorm2d (training-mode batch statistics)."""
    # Static BN selection, same as the torch module's .index() lookup.
    if pruning_rate is None:
        pruning_rate = max(pruning_rate_list)
    idx = pruning_rate_list.index(pruning_rate)
    gamma = jnp.asarray(gammas[idx], jnp.float32).reshape(-1, 1)  # (C, 1)
    beta = jnp.asarray(betas[idx], jnp.float32).reshape(-1, 1)    # (C, 1)

    n, c, h, w = x_nchw.shape
    hw = h * w
    hwp = ((hw + 127) // 128) * 128          # lane-dense padded spatial extent
    x3d = x_nchw.reshape(n, c, hw)           # contiguous reshape: no relayout
    if hwp != hw:
        x3d = jnp.pad(x3d, ((0, 0), (0, 0), (0, hwp - hw)))  # zero pad
    inv_count = 1.0 / float(n * hw)          # real count; zero pad drops out

    itemsize = x_nchw.dtype.itemsize
    vmem_limit = _vmem_limit_bytes()
    nbytes_p = n * c * hwp * itemsize

    # ---- Fused single-pass path for small activations (2x HBM traffic) ----
    fused_est = 2 * nbytes_p + 3 * n * c * hwp * 4   # in + out + f32 temps
    if not force_two_pass and fused_est <= vmem_limit // 2:
        out3d = pl.pallas_call(
            functools.partial(_fused_kernel, inv_count=inv_count),
            out_shape=jax.ShapeDtypeStruct((n, c, hwp), x_nchw.dtype),
            compiler_params=pltpu.CompilerParams(vmem_limit_bytes=vmem_limit),
            cost_estimate=pl.CostEstimate(
                flops=5 * n * c * hwp, transcendentals=c,
                bytes_accessed=2 * nbytes_p),
        )(x3d, gamma, beta)
    else:
        # ---- Two-pass streaming path ----
        max_block = min(8 * 1024 * 1024, vmem_limit // 6)
        tc, thw = _pick_tiles(c, hwp, itemsize, max_block)
        grid = (c // tc, n, hwp // thw)

        # x tile: leading N dim squeezed; (channels, spatial) on (sublane, lane).
        x_spec = pl.BlockSpec((None, tc, thw), lambda ci, ni, mi: (ni, ci, mi))
        # Per-channel vectors: constant across the reduction axes.
        vec_spec = pl.BlockSpec((tc, 1), lambda ci, ni, mi: (ci, 0))

        # Pass 1: per-channel scale / shift.
        scale, shift = pl.pallas_call(
            functools.partial(_stats_kernel, inv_count=inv_count),
            out_shape=(jax.ShapeDtypeStruct((c, 1), jnp.float32),
                       jax.ShapeDtypeStruct((c, 1), jnp.float32)),
            grid_spec=pltpu.PrefetchScalarGridSpec(
                num_scalar_prefetch=0,
                grid=grid,
                in_specs=[x_spec, vec_spec, vec_spec],
                out_specs=(vec_spec, vec_spec),
                scratch_shapes=[pltpu.VMEM((tc, 128), jnp.float32),
                                pltpu.VMEM((tc, 128), jnp.float32)]),
            compiler_params=pltpu.CompilerParams(
                dimension_semantics=("parallel", "arbitrary", "arbitrary"),
                vmem_limit_bytes=vmem_limit),
            cost_estimate=pl.CostEstimate(
                flops=3 * n * c * hwp, transcendentals=c,
                bytes_accessed=nbytes_p),
        )(x3d, gamma, beta)

        # Pass 2: streaming normalize (no reduction -> all axes parallel).
        out3d = pl.pallas_call(
            _norm_kernel,
            out_shape=jax.ShapeDtypeStruct((n, c, hwp), x_nchw.dtype),
            grid_spec=pltpu.PrefetchScalarGridSpec(
                num_scalar_prefetch=0,
                grid=grid,
                in_specs=[x_spec, vec_spec, vec_spec],
                out_specs=x_spec),
            compiler_params=pltpu.CompilerParams(
                dimension_semantics=("parallel", "parallel", "parallel"),
                vmem_limit_bytes=vmem_limit),
            cost_estimate=pl.CostEstimate(
                flops=2 * n * c * hwp, transcendentals=0,
                bytes_accessed=2 * nbytes_p),
        )(x3d, scale, shift)

    if hwp != hw:
        out3d = out3d[:, :, :hw]
    return out3d.reshape(n, c, h, w)


# --------------------------------------------------------------------------
# Pure-JAX reference (two-pass variance) for the correctness check
# --------------------------------------------------------------------------
def _reference_bn2d(x_nchw, gamma, beta):
    x = x_nchw.astype(jnp.float32)
    mean = jnp.mean(x, axis=(0, 2, 3), keepdims=True)
    var = jnp.mean((x - mean) ** 2, axis=(0, 2, 3), keepdims=True)  # biased
    y = (x - mean) / jnp.sqrt(var + _EPS)
    return y * gamma.reshape(1, -1, 1, 1) + beta.reshape(1, -1, 1, 1)


def _make_params(key_g, key_b, c, n_rates):
    gammas = [1.0 + 0.1 * jax.random.normal(jax.random.fold_in(key_g, i), (c,))
              for i in range(n_rates)]
    betas = [0.1 * jax.random.normal(jax.random.fold_in(key_b, i), (c,))
             for i in range(n_rates)]
    return gammas, betas


if __name__ == "__main__":
    key = jax.random.PRNGKey(0)
    kx, kg, kb = jax.random.split(key, 3)

    pruning_rate_list = [0.25, 0.5, 0.75]
    idx = pruning_rate_list.index(max(pruning_rate_list))

    # Test 1: small NCHW input -> fused single-pass path.
    N, C, H, W = 2, 4, 16, 16
    x = jax.random.normal(kx, (N, C, H, W), dtype=jnp.float32)
    gammas, betas = _make_params(kg, kb, C, len(pruning_rate_list))
    y = jax.block_until_ready(
        switchable_batchnorm2d(x, gammas, betas, pruning_rate_list))
    y_ref = _reference_bn2d(x, gammas[idx], betas[idx])
    assert y.shape == (N, C, H, W)
    assert jnp.max(jnp.abs(y - y_ref)) < 1e-4

    # Test 2: same input through the two-pass streaming path.
    y2 = jax.block_until_ready(
        switchable_batchnorm2d(x, gammas, betas, pruning_rate_list,
                               force_two_pass=True))
    assert jnp.max(jnp.abs(y2 - y_ref)) < 1e-4

    # Test 3: odd spatial extent (H*W % 128 != 0) -> exercises the zero-pad
    # path, still through the two-pass streaming kernels.
    N2, C2, H2, W2 = 2, 8, 15, 15
    x2 = jax.random.normal(jax.random.fold_in(kx, 1), (N2, C2, H2, W2),
                           dtype=jnp.float32)
    gammas2, betas2 = _make_params(jax.random.fold_in(kg, 7),
                                   jax.random.fold_in(kb, 7),
                                   C2, len(pruning_rate_list))
    y3 = jax.block_until_ready(
        switchable_batchnorm2d(x2, gammas2, betas2, pruning_rate_list,
                               force_two_pass=True))
    y3_ref = _reference_bn2d(x2, gammas2[idx], betas2[idx])
    assert y3.shape == (N2, C2, H2, W2)
    assert jnp.max(jnp.abs(y3 - y3_ref)) < 1e-4

    print("KERNEL_OK")
</pallas_src>

<mosaic_0001>
module attributes {stable_mosaic.version = 11 : i64} {
  func.func @_fused_kernel(%arg0: memref<2x4x256xf32, #tpu.memory_space<vmem>>, %arg1: memref<4x1xf32, #tpu.memory_space<vmem>>, %arg2: memref<4x1xf32, #tpu.memory_space<vmem>>, %arg3: memref<2x4x256xf32, #tpu.memory_space<vmem>>) attributes {dimension_semantics = [], scalar_prefetch = 0 : i64, scratch_operands = 0 : i64, tpu.core_type = #tpu.core_type<tc>} {
    %c0 = arith.constant 0 : index
    %c0_0 = arith.constant 0 : index
    %c0_1 = arith.constant 0 : index
    %0 = vector.load %arg0[%c0, %c0_0, %c0_1] : memref<2x4x256xf32, #tpu.memory_space<vmem>>, vector<2x4x256xf32>
    %cst = arith.constant dense<0.000000e+00> : vector<4x256xf32>
    %1 = vector.multi_reduction <add>, %0, %cst [0] : vector<2x4x256xf32> to vector<4x256xf32>
    %2 = arith.mulf %0, %0 : vector<2x4x256xf32>
    %cst_2 = arith.constant dense<0.000000e+00> : vector<4x256xf32>
    %3 = vector.multi_reduction <add>, %2, %cst_2 [0] : vector<2x4x256xf32> to vector<4x256xf32>
    %cst_3 = arith.constant dense<0.000000e+00> : vector<4xf32>
    %4 = vector.multi_reduction <add>, %1, %cst_3 [1] : vector<4x256xf32> to vector<4xf32>
    %5 = vector.shape_cast %4 : vector<4xf32> to vector<4x1xf32>
    %cst_4 = arith.constant 0.001953125 : f32
    %6 = vector.broadcast %cst_4 : f32 to vector<4x1xf32>
    %7 = arith.mulf %5, %6 : vector<4x1xf32>
    %cst_5 = arith.constant dense<0.000000e+00> : vector<4xf32>
    %8 = vector.multi_reduction <add>, %3, %cst_5 [1] : vector<4x256xf32> to vector<4xf32>
    %9 = vector.shape_cast %8 : vector<4xf32> to vector<4x1xf32>
    %cst_6 = arith.constant 0.001953125 : f32
    %10 = vector.broadcast %cst_6 : f32 to vector<4x1xf32>
    %11 = arith.mulf %9, %10 : vector<4x1xf32>
    %12 = arith.mulf %7, %7 : vector<4x1xf32>
    %13 = arith.subf %11, %12 : vector<4x1xf32>
    %cst_7 = arith.constant 0.000000e+00 : f32
    %14 = vector.broadcast %cst_7 : f32 to vector<4x1xf32>
    %15 = arith.maximumf %13, %14 : vector<4x1xf32>
    %cst_8 = arith.constant 9.99999974E-6 : f32
    %16 = vector.broadcast %cst_8 : f32 to vector<4x1xf32>
    %17 = arith.addf %15, %16 : vector<4x1xf32>
    %18 = math.rsqrt %17 : vector<4x1xf32>
    %c0_9 = arith.constant 0 : index
    %c0_10 = arith.constant 0 : index
    %19 = vector.load %arg1[%c0_9, %c0_10] : memref<4x1xf32, #tpu.memory_space<vmem>>, vector<4x1xf32>
    %20 = arith.mulf %19, %18 : vector<4x1xf32>
    %c0_11 = arith.constant 0 : index
    %c0_12 = arith.constant 0 : index
    %21 = vector.load %arg2[%c0_11, %c0_12] : memref<4x1xf32, #tpu.memory_space<vmem>>, vector<4x1xf32>
    %22 = arith.mulf %7, %20 : vector<4x1xf32>
    %23 = arith.subf %21, %22 : vector<4x1xf32>
    %24 = vector.shape_cast %20 : vector<4x1xf32> to vector<1x4x1xf32>
    %25 = vector.broadcast %24 : vector<1x4x1xf32> to vector<2x4x256xf32>
    %26 = arith.mulf %0, %25 : vector<2x4x256xf32>
    %27 = vector.shape_cast %23 : vector<4x1xf32> to vector<1x4x1xf32>
    %28 = vector.broadcast %27 : vector<1x4x1xf32> to vector<2x4x256xf32>
    %29 = arith.addf %26, %28 : vector<2x4x256xf32>
    %c0_13 = arith.constant 0 : index
    %c0_14 = arith.constant 0 : index
    %c0_15 = arith.constant 0 : index
    %30 = vector.load %arg3[%c0_13, %c0_14, %c0_15] : memref<2x4x256xf32, #tpu.memory_space<vmem>>, vector<2x4x256xf32>
    tpu.vector_store %arg3[%c0_13, %c0_14, %c0_15], %29 {strides = array<i32>} : memref<2x4x256xf32, #tpu.memory_space<vmem>>, vector<2x4x256xf32>,
    return
  }
}

</mosaic_0001>

<llo_original>
// kernel: tpu_custom_call.1
$region0: #{tpu_custom_call.1}
  #allocation0 [shape = 'u32[]', space=smem, size = 0x4, offset = 0x4, fixed_abs, tag = 'smem constant byte address 0x4 - core index']
  #allocation1 [shape = 'u32[144,128]{1,0:T(1,128)}', space=vmem, size = 0x12000, scoped, tag = 'internal scratch']
  %s0 = inlined_call_operand.hbm [shape: f32[2,4,256], index: 0, kind: input, shape index: {}]
  %s1 = inlined_call_operand.vmem [shape: f32[4,1], index: 1, kind: input, shape index: {}]
  %s2 = inlined_call_operand.vmem [shape: f32[4,1], index: 2, kind: input, shape index: {}]
  %s3 = inlined_call_operand.hbm [shape: f32[2,4,256], index: 3, kind: output, shape index: {}]
  %s4 = sld [smem:[#allocation0]]
  $region26: #{tpu_custom_call.1} parent=0
    _
  %s6 = ssub.s32 1, %s4
  %s7 = scalar_select 0, %s6, %s4
  $region1: #{tpu_custom_call.1} parent=0
    #allocation2 [shape = 'u8[8192]{0}', space=vmem, size = 0x2000, scoped, tag = 'input window, operand 0, single buffered']
    #allocation3 [shape = 's32[1]{0}', space=sflag, size = 0x4, scoped, tag = 'scoped memory for tpu_custom_call.1']
    #allocation4 [shape = 's32[1]{0}', space=sflag, size = 0x4, scoped, tag = 'scoped memory for tpu_custom_call.1']
    #allocation5 [shape = 'u8[8192]{0}', space=vmem, size = 0x2000, scoped, tag = 'output window, operand 0, single buffered']
    %8 = vsyncpa [#allocation3], 0
    %9 = vsyncpa [#allocation4], 0
    // Predicated region
    $region2: #{tpu_custom_call.1} parent=1 // pred_check
      _
    $region3: #{tpu_custom_call.1} parent=1 // pred_check_branch
      %11 = sbr.rel (0) target = $region5
    $region4: #{tpu_custom_call.1} parent=1 // pred_region
      %s13 = ssub.s32 256, 256
      %14 = vsyncadd [#allocation3], %s13
      %s15 = sshll.u32 [#allocation2], 4
      %s16 = int_to_ptr.vmem [resolvable:$true] %s15
      %21 = dma.hbm_to_vmem [thread:$0]  %s0, 256, %s16, [#allocation3], 128, 128, 8
    $region5: #{tpu_custom_call.1} parent=1 // pred_fallthru
      _
    // Predicated region
    $region6: #{tpu_custom_call.1} parent=1 // pred_check
      _
    $region7: #{tpu_custom_call.1} parent=1 // pred_check_branch
      %23 = sbr.rel (0) target = $region9
    $region8: #{tpu_custom_call.1} parent=1 // pred_region
      _
    $region9: #{tpu_custom_call.1} parent=1 // pred_fallthru
      _
    // Predicated region
    $region10: #{tpu_custom_call.1} parent=1 // pred_check
      _
    $region11: #{tpu_custom_call.1} parent=1 // pred_check_branch
      %25 = sbr.rel (0) target = $region13
    $region12: #{tpu_custom_call.1} parent=1 // pred_region
      _
    $region13: #{tpu_custom_call.1} parent=1 // pred_fallthru
      _
    // Predicated region
    $region14: #{tpu_custom_call.1} parent=1 // pred_check
      _
    $region15: #{tpu_custom_call.1} parent=1 // pred_check_branch
      %27 = sbr.rel (0) target = $region17
    $region16: #{tpu_custom_call.1} parent=1 // pred_region
      %28 = dma.done [#allocation3], 256
    $region17: #{tpu_custom_call.1} parent=1 // pred_fallthru
      _
    %v29 = vld [vmem:[#allocation2] sm:$0xff]
    %v30 = vld [vmem:[#allocation2 + $0x8] sm:$0xff]
    %v33 = vcombine.high %v29, %v29
    %v34 = vcombine.high %v30, %v30
    %vm37 = vcmask 1043456
    %v38 = vsel %vm37, %v29, 0.0
    %v39 = vsel %vm37, %v30, 0.0
    %v40 = vadd.f32 %v38, %v39
    %v41 = vsel %vm37, %v33, 0.0
    %v42 = vsel %vm37, %v34, 0.0
    %v43 = vadd.f32 %v41, %v42
    %v44 = vmul.f32 %v29, %v29
    %v45 = vmul.f32 %v30, %v30
    %v48 = vcombine.high %v44, %v44
    %v49 = vcombine.high %v45, %v45
    %v52 = vsel %vm37, %v44, 0.0
    %v53 = vsel %vm37, %v45, 0.0
    %v54 = vadd.f32 %v52, %v53
    %v55 = vsel %vm37, %v48, 0.0
    %v56 = vsel %vm37, %v49, 0.0
    %v57 = vadd.f32 %v55, %v56
    %v58 = vsel %vm37, %v40, 0.0
    %v59 = vsel %vm37, %v43, 0.0
    %v60 = vadd.f32 %v58, %v59
    %61 = vadd.xlane.f32.xlu0 %v60
    %v62 = vpop.xlane.xlu0 %61
    %v63 = vmul.f32 %v62, 0.001953125
    %v64 = vsel %vm37, %v54, 0.0
    %v65 = vsel %vm37, %v57, 0.0
    %v66 = vadd.f32 %v64, %v65
    %67 = vadd.xlane.f32.xlu0 %v66
    %v68 = vpop.xlane.xlu0 %67
    %v69 = vmul.f32 %v68, 0.001953125
    %v70 = vmul.f32 %v63, %v63
    %v71 = vsub.f32 %v69, %v70
    %v72 = vmax.f32 %v71, 0.0
    %v73 = vadd.f32 %v72, 1e-05
    %v74 = vrsqrt.pop %v73
    %v75 = vld [vmem:[%s1] sm:$0xf]
    %v76 = vmul.f32 %v75, %v74
    %v77 = vld [vmem:[%s2] sm:$0xf]
    %v78 = vmul.f32 %v63, %v76
    %v79 = vsub.f32 %v77, %v78
    %81 = vset.pattern.permute.xlu0 0
    %82 = vperm.xlu0 %81, %v76
    %v83 = vpop.permute.xlu0 %82
    %v85 = vunpack.c.l.s4 839922192
    %v86 = vunpack.c.0.s8 %v85
    %v87 = vlaneseq
    %v88 = vshrl.u32 %v87, 7
    %v89 = vsub.s32 %v86, %v88
    %v90 = vrot.slane %v83, %v89
    %v92 = vmul.f32 %v29, %v90
    %v93 = vmul.f32 %v30, %v90
    %95 = vset.pattern.permute.xlu0 0
    %96 = vperm.xlu0 %95, %v79
    %v97 = vpop.permute.xlu0 %96
    %v99 = vunpack.c.l.s4 839922192
    %v100 = vunpack.c.0.s8 %v99
    %v101 = vlaneseq
    %v102 = vshrl.u32 %v101, 7
    %v103 = vsub.s32 %v100, %v102
    %v104 = vrot.slane %v97, %v103
    %v106 = vadd.f32 %v92, %v104
    %v107 = vadd.f32 %v93, %v104
    %108 = vst [vmem:[#allocation5] sm:$0xff] %v106
    %109 = vst [vmem:[#allocation5 + $0x8] sm:$0xff] %v107
    // Predicated region
    $region18: #{tpu_custom_call.1} parent=1 // pred_check
      _
    $region19: #{tpu_custom_call.1} parent=1 // pred_check_branch
      %111 = sbr.rel (0) target = $region21
    $region20: #{tpu_custom_call.1} parent=1 // pred_region
      %s113 = ssub.s32 256, 256
      %114 = vsyncadd [#allocation4], %s113
      %s115 = sshll.u32 [#allocation5], 4
      %s116 = int_to_ptr.vmem [resolvable:$true] %s115
      %121 = dma.vmem_to_hbm [thread:$0]  %s116, 256, %s3, [#allocation4], 128, 128, 8
    $region21: #{tpu_custom_call.1} parent=1 // pred_fallthru
      _
    // Predicated region
    $region22: #{tpu_custom_call.1} parent=1 // pred_check
      _
    $region23: #{tpu_custom_call.1} parent=1 // pred_check_branch
      %123 = sbr.rel (0) target = $region25
    $region24: #{tpu_custom_call.1} parent=1 // pred_region
      %124 = dma.done [#allocation4], 256
    $region25: #{tpu_custom_call.1} parent=1 // pred_fallthru
      _
    %125 = vsyncpa [#allocation3], 1
    %126 = vsyncpa [#allocation4], 1

</llo_original>
